<compile_context>
chip_gen: v5e
topology: v5e:2x2
jax: 0.10.0
libtpu: 0.0.40
codegen_flags: <defaults>
</compile_context>

<pallas_src>
import functools

import jax
import jax.numpy as jnp
from jax import lax
from jax.experimental import pallas as pl
from jax.experimental.pallas import tpu as pltpu

_LANES = 128   # lane padding for the packed MLP-head blocks


def _round_up(x, m):
    return ((x + m - 1) // m) * m


# ----------------------------------------------------------------------------
# Pallas kernel: one-hot embedding + hoisted input projection + LSTM
# recurrence + MLP head.  Single grid step; all blocked operands are full
# arrays; head weights are fetched by a manual, overlapped DMA.
# ----------------------------------------------------------------------------
def _lstm_mlp_kernel(tok_ref, emb_ref, wih_ref, whh_ref, b_ref,
                     hw_hbm, hb_hbm, out_ref,
                     hw_vmem, hb_vmem, dma_sem):
    SB = tok_ref.shape[0]           # S * B (time-major)
    V, E = emb_ref.shape
    H, G = whh_ref.shape            # G == 4*H
    B, C = out_ref.shape
    S = SB // B

    # ---- Kick off the head-weight DMA now; it is not needed until after the
    # S-step serial recurrence, so it rides for free under the compute.
    hw_cp = pltpu.make_async_copy(hw_hbm, hw_vmem, dma_sem.at[0])
    hb_cp = pltpu.make_async_copy(hb_hbm, hb_vmem, dma_sem.at[1])
    hw_cp.start()
    hb_cp.start()

    # ---- Embedding lookup fused in-kernel as a one-hot MXU matmul (V is tiny).
    tok = tok_ref[...]                                        # (S*B, 1) int32
    vocab = lax.broadcasted_iota(jnp.int32, (SB, V), 1)
    onehot = (vocab == tok).astype(jnp.float32)               # (S*B, V)
    x_emb = jnp.dot(onehot, emb_ref[...],
                    preferred_element_type=jnp.float32)       # (S*B, E)

    # ---- Input projection for ALL time steps in one MXU matmul, with the
    # prescaled, pre-summed LSTM bias folded in.  Stays in vregs (2 vregs).
    xp_all = (jnp.dot(x_emb, wih_ref[...],
                      preferred_element_type=jnp.float32)
              + b_ref[...])                                   # (S*B, 4H)

    whh = whh_ref[...]                                        # loop-invariant

    # ---- Hoisted sigmoid-via-tanh fixup: i/f/o gate columns were prescaled
    # by 0.5 offline, so sigmoid(x) = 0.5*tanh(x/2) + 0.5; the g gate
    # (columns [2H, 3H)) keeps plain tanh.
    lane = lax.broadcasted_iota(jnp.int32, (1, G), 1)
    is_g = (lane >= 2 * H) & (lane < 3 * H)
    scale = jnp.broadcast_to(jnp.where(is_g, 1.0, 0.5), (B, G))
    offset = jnp.broadcast_to(jnp.where(is_g, 0.0, 0.5), (B, G))

    # ---- LSTM recurrence: one (B,H)@(H,4H) matmul + ONE full-width tanh per
    # step.  Static Python unroll => straight-line code with static vreg
    # slices (no VMEM scratch, no dynamic indexing on the serial chain).
    # TODO(synk): re-introduce a time grid / pltpu.emit_pipeline over S-chunks
    # if S*B grows large (the whole-sequence block hits the VMEM wall at
    # roughly half the S*B on v7x vs v6e).
    h = jnp.zeros((B, H), jnp.float32)
    c = jnp.zeros((B, H), jnp.float32)
    for t in range(S):
        pre = xp_all[t * B:(t + 1) * B, :] + jnp.dot(
            h, whh, preferred_element_type=jnp.float32)        # (B, 4H)
        act = jnp.tanh(pre) * scale + offset                   # 1 EUP dispatch
        i_g = act[:, 0 * H:1 * H]
        f_g = act[:, 1 * H:2 * H]
        g_g = act[:, 2 * H:3 * H]
        o_g = act[:, 3 * H:4 * H]
        c = f_g * c + i_g * g_g
        h = o_g * jnp.tanh(c)

    # ---- Classifier head on the final CELL state (PyTorch `hidden[-1]` of
    # the (h_n, c_n) tuple is c_n).  Dropout(0.35) is identity in eval mode.
    hw_cp.wait()
    hb_cp.wait()
    r2 = _round_up(H, 8)
    w1 = hw_vmem[0:H, :]                # (H, 128),  lanes >= 64 are zero
    w2 = hw_vmem[r2:r2 + 64, :]         # (64, 128), lanes >= 16 are zero
    w3 = hw_vmem[r2 + 64:r2 + 80, :]    # (16, 128), lanes >= C  are zero
    b1 = hb_vmem[0:1, :]
    b2 = hb_vmem[1:2, :]
    b3 = hb_vmem[2:3, :]

    z1 = jax.nn.sigmoid(jnp.dot(c, w1, preferred_element_type=jnp.float32)
                        + b1)                                  # (B, 128)
    # Garbage (sigmoid(0)=0.5) in z1 lanes >=64 / z2 lanes >=16 never reaches
    # the next matmul: the contraction dim is sliced to the valid lanes.
    z2 = jax.nn.sigmoid(jnp.dot(z1[:, :64], w2,
                                preferred_element_type=jnp.float32) + b2)
    logits = jnp.dot(z2[:, :16], w3,
                     preferred_element_type=jnp.float32) + b3  # (B, 128)
    out_ref[...] = logits[:, :C].astype(out_ref.dtype)


# ----------------------------------------------------------------------------
# One-time, offline parameter preparation (runs once, NOT per forward).
# ----------------------------------------------------------------------------
def prepare_params(params):
    H = params["w_hh_t"].shape[0]
    G = 4 * H
    C = params["w3_t"].shape[1]

    # 0.5 prescale on the i/f/o gate columns so the kernel can use a single
    # full-width tanh per step (sigmoid(x) = 0.5*tanh(x/2) + 0.5).
    col = jnp.arange(G)
    is_g = (col >= 2 * H) & (col < 3 * H)
    gate_scale = jnp.where(is_g, 1.0, 0.5).astype(jnp.float32)       # (G,)
    w_ih_s = params["w_ih_t"] * gate_scale[None, :]
    w_hh_s = params["w_hh_t"] * gate_scale[None, :]
    b_s = ((params["b_ih"] + params["b_hh"]) * gate_scale).reshape(1, G)

    # Sublane-packed head: rows 0:H=w1, r2:r2+64=w2, r2+64:r2+80=w3; lanes
    # zero-padded to 128.  ~56 KB instead of the old 196 KB (3,128,128) pack.
    r2 = _round_up(H, 8)
    head_rows = _round_up(r2 + 64 + 16, 8)
    hw = jnp.zeros((head_rows, _LANES), jnp.float32)
    hw = hw.at[0:H, 0:64].set(params["w1_t"])
    hw = hw.at[r2:r2 + 64, 0:16].set(params["w2_t"])
    hw = hw.at[r2 + 64:r2 + 80, 0:C].set(params["w3_t"])
    hb = jnp.zeros((8, _LANES), jnp.float32)
    hb = hb.at[0, 0:64].set(params["b1"])
    hb = hb.at[1, 0:16].set(params["b2"])
    hb = hb.at[2, 0:C].set(params["b3"])

    return {
        "embedding": params["embedding"].astype(jnp.float32),
        "w_ih_s": w_ih_s,
        "w_hh_s": w_hh_s,
        "b_s": b_s,
        "head_w": hw,
        "head_b": hb,
    }


# ----------------------------------------------------------------------------
# Forward wrapper: one pallas_call, grid=(1,).
# ----------------------------------------------------------------------------
def rnn_classifier_forward(tokens, p, *, num_classes):
    """tokens: (S, B) int32.  p: prepare_params(...).  Returns (B, C) f32."""
    S, B = tokens.shape
    V, E = p["embedding"].shape
    H, G = p["w_hh_s"].shape
    C = num_classes
    head_rows = p["head_w"].shape[0]

    # Time-major flatten so row t*B+b holds (step t, batch b).
    tok = tokens.reshape(S * B, 1).astype(jnp.int32)

    full2 = lambda i: (0, 0)

    # TODO(synk): if B grows beyond toy scale, add a leading "parallel" batch
    # grid axis so v7x's second TensorCore gets independent sequences.
    grid_spec = pltpu.PrefetchScalarGridSpec(
        num_scalar_prefetch=0,
        grid=(1,),                                      # single invocation
        in_specs=[
            pl.BlockSpec((S * B, 1), full2),            # token ids
            pl.BlockSpec((V, E), full2),                # embedding table
            pl.BlockSpec((E, G), full2),                # prescaled W_ih^T
            pl.BlockSpec((H, G), full2),                # prescaled W_hh^T
            pl.BlockSpec((1, G), full2),                # prescaled b_ih+b_hh
            pl.BlockSpec(memory_space=pl.ANY),          # packed head W (manual DMA)
            pl.BlockSpec(memory_space=pl.ANY),          # packed head b (manual DMA)
        ],
        out_specs=pl.BlockSpec((B, C), full2),
        scratch_shapes=[
            pltpu.VMEM((head_rows, _LANES), jnp.float32),   # head W landing buf
            pltpu.VMEM((8, _LANES), jnp.float32),           # head b landing buf
            pltpu.SemaphoreType.DMA((2,)),
        ],
    )

    return pl.pallas_call(
        _lstm_mlp_kernel,
        out_shape=jax.ShapeDtypeStruct((B, C), jnp.float32),
        grid_spec=grid_spec,
        compiler_params=pltpu.CompilerParams(
            dimension_semantics=("arbitrary",)),
    )(tok, p["embedding"], p["w_ih_s"], p["w_hh_s"], p["b_s"],
      p["head_w"], p["head_b"])


# ----------------------------------------------------------------------------
# Pure-JAX reference on the ORIGINAL params (correctness check only).
# ----------------------------------------------------------------------------
def rnn_classifier_reference(tokens, params):
    embeds = params["embedding"][tokens]                # (S, B, E)
    S, B, E = embeds.shape
    H = params["w_hh_t"].shape[0]
    b = params["b_ih"] + params["b_hh"]

    def step(carry, x_t):
        h, c = carry
        gates = x_t @ params["w_ih_t"] + h @ params["w_hh_t"] + b
        i = jax.nn.sigmoid(gates[:, 0 * H:1 * H])
        f = jax.nn.sigmoid(gates[:, 1 * H:2 * H])
        g = jnp.tanh(gates[:, 2 * H:3 * H])
        o = jax.nn.sigmoid(gates[:, 3 * H:4 * H])
        c_new = f * c + i * g
        h_new = o * jnp.tanh(c_new)
        return (h_new, c_new), None

    h0 = jnp.zeros((B, H), jnp.float32)
    c0 = jnp.zeros((B, H), jnp.float32)
    (h_n, c_n), _ = lax.scan(step, (h0, c0), embeds)
    x = c_n                                             # hidden[-1] == c_n
    x = jax.nn.sigmoid(x @ params["w1_t"] + params["b1"])
    x = jax.nn.sigmoid(x @ params["w2_t"] + params["b2"])
    return x @ params["w3_t"] + params["b3"]


# ----------------------------------------------------------------------------
# Deterministic synthetic parameters.
# ----------------------------------------------------------------------------
def init_params(key, num_embeddings, embedding_dim, hidden_size, num_classes):
    ks = jax.random.split(key, 12)
    V, E, H, C = num_embeddings, embedding_dim, hidden_size, num_classes
    u = lambda k, shp, s: jax.random.uniform(k, shp, jnp.float32, -s, s)
    s_lstm = 1.0 / jnp.sqrt(H)

    emb = jax.random.normal(ks[0], (V, E), jnp.float32)
    emb = emb.at[0].set(0.0)                            # padding_idx=0

    return {
        "embedding": emb,
        "w_ih_t": u(ks[1], (E, 4 * H), s_lstm),         # W_ih^T
        "w_hh_t": u(ks[2], (H, 4 * H), s_lstm),         # W_hh^T
        "b_ih": u(ks[3], (4 * H,), s_lstm),
        "b_hh": u(ks[4], (4 * H,), s_lstm),
        "w1_t": u(ks[5], (H, 64), 1.0 / jnp.sqrt(H)),
        "b1": u(ks[6], (64,), 1.0 / jnp.sqrt(H)),
        "w2_t": u(ks[7], (64, 16), 1.0 / jnp.sqrt(64.0)),
        "b2": u(ks[8], (16,), 1.0 / jnp.sqrt(64.0)),
        "w3_t": u(ks[9], (16, C), 1.0 / jnp.sqrt(16.0)),
        "b3": u(ks[10], (C,), 1.0 / jnp.sqrt(16.0)),
    }


if __name__ == "__main__":
    # view(batch_size, 10) requires num_layers * num_classes == 10
    # => num_layers=1, num_classes=10.
    NUM_EMBEDDINGS = 50
    EMBEDDING_DIM = 16
    HIDDEN_SIZE = 32
    NUM_CLASSES = 10
    SEQ_LEN = 8
    BATCH = 2

    key = jax.random.PRNGKey(0)
    k_tok, k_par = jax.random.split(key)
    params = init_params(k_par, NUM_EMBEDDINGS, EMBEDDING_DIM,
                         HIDDEN_SIZE, NUM_CLASSES)
    tokens = jax.random.randint(k_tok, (SEQ_LEN, BATCH), 0, NUM_EMBEDDINGS,
                                dtype=jnp.int32)

    prepared = prepare_params(params)   # one-time offline packing / prescaling

    fwd = jax.jit(functools.partial(rnn_classifier_forward,
                                    num_classes=NUM_CLASSES))
    out = jax.block_until_ready(fwd(tokens, prepared))

    ref = rnn_classifier_reference(tokens, params)
    assert out.shape == (BATCH, NUM_CLASSES), out.shape
    assert jnp.allclose(out, ref, atol=1e-4, rtol=1e-4), (out, ref)

    print("KERNEL_OK")
</pallas_src>

<mosaic_0001>
module attributes {stable_mosaic.version = 11 : i64} {
  func.func @_lstm_mlp_kernel(%arg0: i32, %arg1: memref<16x1xi32, #tpu.memory_space<vmem>>, %arg2: memref<50x16xf32, #tpu.memory_space<vmem>>, %arg3: memref<16x128xf32, #tpu.memory_space<vmem>>, %arg4: memref<32x128xf32, #tpu.memory_space<vmem>>, %arg5: memref<1x128xf32, #tpu.memory_space<vmem>>, %arg6: memref<112x128xf32, #tpu.memory_space<any>>, %arg7: memref<8x128xf32, #tpu.memory_space<any>>, %arg8: memref<2x10xf32, #tpu.memory_space<vmem>>, %arg9: memref<112x128xf32, #tpu.memory_space<vmem>>, %arg10: memref<8x128xf32, #tpu.memory_space<vmem>>, %arg11: memref<2x!tpu.dma_semaphore, #tpu.memory_space<semaphore_mem>>) attributes {dimension_semantics = [#tpu.dimension_semantics<arbitrary>], iteration_bounds = array<i64: 1>, scalar_prefetch = 0 : i64, scratch_operands = 3 : i64, tpu.core_type = #tpu.core_type<tc>, window_params = [{pipeline_mode = #tpu.pipeline_mode<synchronous>, transform_indices = @transform_0, window_bounds = array<i64: 16, 1>}, {pipeline_mode = #tpu.pipeline_mode<synchronous>, transform_indices = @transform_1, window_bounds = array<i64: 50, 16>}, {pipeline_mode = #tpu.pipeline_mode<synchronous>, transform_indices = @transform_2, window_bounds = array<i64: 16, 128>}, {pipeline_mode = #tpu.pipeline_mode<synchronous>, transform_indices = @transform_3, window_bounds = array<i64: 32, 128>}, {pipeline_mode = #tpu.pipeline_mode<synchronous>, transform_indices = @transform_4, window_bounds = array<i64: 1, 128>}, {}, {}, {pipeline_mode = #tpu.pipeline_mode<synchronous>, transform_indices = @transform_7, window_bounds = array<i64: 2, 10>}]} {
    %c0_i32 = arith.constant 0 : i32
    %0 = tpu.memref_slice %arg11[%c0_i32] : memref<2x!tpu.dma_semaphore, #tpu.memory_space<semaphore_mem>> -> memref<1x!tpu.dma_semaphore, #tpu.memory_space<semaphore_mem>>
    %1 = tpu.memref_squeeze %0 : memref<1x!tpu.dma_semaphore, #tpu.memory_space<semaphore_mem>> -> memref<!tpu.dma_semaphore, #tpu.memory_space<semaphore_mem>>
    tpu.enqueue_dma source(%arg6 : memref<112x128xf32, #tpu.memory_space<any>>) target(%arg9 : memref<112x128xf32, #tpu.memory_space<vmem>>) target_semaphore(%1 : memref<!tpu.dma_semaphore, #tpu.memory_space<semaphore_mem>>)
    %c1_i32 = arith.constant 1 : i32
    %2 = tpu.memref_slice %arg11[%c1_i32] : memref<2x!tpu.dma_semaphore, #tpu.memory_space<semaphore_mem>> -> memref<1x!tpu.dma_semaphore, #tpu.memory_space<semaphore_mem>>
    %3 = tpu.memref_squeeze %2 : memref<1x!tpu.dma_semaphore, #tpu.memory_space<semaphore_mem>> -> memref<!tpu.dma_semaphore, #tpu.memory_space<semaphore_mem>>
    tpu.enqueue_dma source(%arg7 : memref<8x128xf32, #tpu.memory_space<any>>) target(%arg10 : memref<8x128xf32, #tpu.memory_space<vmem>>) target_semaphore(%3 : memref<!tpu.dma_semaphore, #tpu.memory_space<semaphore_mem>>)
    %c0 = arith.constant 0 : index
    %c0_0 = arith.constant 0 : index
    %4 = vector.load %arg1[%c0, %c0_0] : memref<16x1xi32, #tpu.memory_space<vmem>>, vector<16x1xi32>
    %5 = tpu.iota {dimensions = array<i32: 1>} : vector<16x50xi32>
    %6 = vector.broadcast %4 : vector<16x1xi32> to vector<16x50xi32>
    %7 = arith.cmpi eq, %5, %6 : vector<16x50xi32>
    %8 = arith.extui %7 : vector<16x50xi1> to vector<16x50xi32>
    %9 = arith.sitofp %8 : vector<16x50xi32> to vector<16x50xf32>
    %c0_1 = arith.constant 0 : index
    %c0_2 = arith.constant 0 : index
    %10 = vector.load %arg2[%c0_1, %c0_2] : memref<50x16xf32, #tpu.memory_space<vmem>>, vector<50x16xf32>
    %cst = arith.constant dense<0.000000e+00> : vector<16x16xf32>
    %11 = tpu.matmul %9, %10, %cst {dimension_numbers = #tpu.dot_dimension_numbers<[1], [0], [0], [1], [0, 0, 1, 1], [], []>} : vector<16x50xf32>, vector<50x16xf32>, vector<16x16xf32> -> vector<16x16xf32>
    %c0_3 = arith.constant 0 : index
    %c0_4 = arith.constant 0 : index
    %12 = vector.load %arg3[%c0_3, %c0_4] : memref<16x128xf32, #tpu.memory_space<vmem>>, vector<16x128xf32>
    %cst_5 = arith.constant dense<0.000000e+00> : vector<16x128xf32>
    %13 = tpu.matmul %11, %12, %cst_5 {dimension_numbers = #tpu.dot_dimension_numbers<[1], [0], [0], [1], [0, 0, 1, 1], [], []>} : vector<16x16xf32>, vector<16x128xf32>, vector<16x128xf32> -> vector<16x128xf32>
    %c0_6 = arith.constant 0 : index
    %c0_7 = arith.constant 0 : index
    %14 = vector.load %arg5[%c0_6, %c0_7] : memref<1x128xf32, #tpu.memory_space<vmem>>, vector<1x128xf32>
    %15 = vector.broadcast %14 : vector<1x128xf32> to vector<16x128xf32>
    %16 = arith.addf %13, %15 : vector<16x128xf32>
    %c0_8 = arith.constant 0 : index
    %c0_9 = arith.constant 0 : index
    %17 = vector.load %arg4[%c0_8, %c0_9] : memref<32x128xf32, #tpu.memory_space<vmem>>, vector<32x128xf32>
    %18 = tpu.iota {dimensions = array<i32: 1>} : vector<1x128xi32>
    %c64_i32 = arith.constant 64 : i32
    %19 = vector.broadcast %c64_i32 : i32 to vector<1x128xi32>
    %20 = arith.cmpi sge, %18, %19 : vector<1x128xi32>
    %c96_i32 = arith.constant 96 : i32
    %21 = vector.broadcast %c96_i32 : i32 to vector<1x128xi32>
    %22 = arith.cmpi slt, %18, %21 : vector<1x128xi32>
    %23 = arith.andi %20, %22 : vector<1x128xi1>
    %cst_10 = arith.constant 1.000000e+00 : f32
    %cst_11 = arith.constant 5.000000e-01 : f32
    %24 = vector.broadcast %cst_10 : f32 to vector<1x128xf32>
    %25 = vector.broadcast %cst_11 : f32 to vector<1x128xf32>
    %26 = arith.select %23, %24, %25 : vector<1x128xi1>, vector<1x128xf32>
    %27 = vector.shape_cast %26 : vector<1x128xf32> to vector<1x128xf32>
    %28 = vector.broadcast %27 : vector<1x128xf32> to vector<2x128xf32>
    %cst_12 = arith.constant 0.000000e+00 : f32
    %cst_13 = arith.constant 5.000000e-01 : f32
    %29 = vector.broadcast %cst_12 : f32 to vector<1x128xf32>
    %30 = vector.broadcast %cst_13 : f32 to vector<1x128xf32>
    %31 = arith.select %23, %29, %30 : vector<1x128xi1>, vector<1x128xf32>
    %32 = vector.shape_cast %31 : vector<1x128xf32> to vector<1x128xf32>
    %33 = vector.broadcast %32 : vector<1x128xf32> to vector<2x128xf32>
    %cst_14 = arith.constant 0.000000e+00 : f32
    %34 = vector.broadcast %cst_14 : f32 to vector<2x32xf32>
    %cst_15 = arith.constant 0.000000e+00 : f32
    %35 = vector.broadcast %cst_15 : f32 to vector<2x32xf32>
    %36 = vector.extract_strided_slice %16 {offsets = [0, 0], sizes = [2, 128], strides = [1, 1]} : vector<16x128xf32> to vector<2x128xf32>
    %cst_16 = arith.constant dense<0.000000e+00> : vector<2x128xf32>
    %37 = tpu.matmul %34, %17, %cst_16 {dimension_numbers = #tpu.dot_dimension_numbers<[1], [0], [0], [1], [0, 0, 1, 1], [], []>} : vector<2x32xf32>, vector<32x128xf32>, vector<2x128xf32> -> vector<2x128xf32>
    %38 = arith.addf %36, %37 : vector<2x128xf32>
    %39 = math.tanh %38 : vector<2x128xf32>
    %40 = arith.mulf %39, %28 : vector<2x128xf32>
    %41 = arith.addf %40, %33 : vector<2x128xf32>
    %42 = vector.extract_strided_slice %41 {offsets = [0, 0], sizes = [2, 32], strides = [1, 1]} : vector<2x128xf32> to vector<2x32xf32>
    %43 = vector.extract_strided_slice %41 {offsets = [0, 32], sizes = [2, 32], strides = [1, 1]} : vector<2x128xf32> to vector<2x32xf32>
    %44 = vector.extract_strided_slice %41 {offsets = [0, 64], sizes = [2, 32], strides = [1, 1]} : vector<2x128xf32> to vector<2x32xf32>
    %45 = vector.extract_strided_slice %41 {offsets = [0, 96], sizes = [2, 32], strides = [1, 1]} : vector<2x128xf32> to vector<2x32xf32>
    %46 = arith.mulf %43, %35 : vector<2x32xf32>
    %47 = arith.mulf %42, %44 : vector<2x32xf32>
    %48 = arith.addf %46, %47 : vector<2x32xf32>
    %49 = math.tanh %48 : vector<2x32xf32>
    %50 = arith.mulf %45, %49 : vector<2x32xf32>
    %51 = vector.extract_strided_slice %16 {offsets = [2, 0], sizes = [2, 128], strides = [1, 1]} : vector<16x128xf32> to vector<2x128xf32>
    %cst_17 = arith.constant dense<0.000000e+00> : vector<2x128xf32>
    %52 = tpu.matmul %50, %17, %cst_17 {dimension_numbers = #tpu.dot_dimension_numbers<[1], [0], [0], [1], [0, 0, 1, 1], [], []>} : vector<2x32xf32>, vector<32x128xf32>, vector<2x128xf32> -> vector<2x128xf32>
    %53 = arith.addf %51, %52 : vector<2x128xf32>
    %54 = math.tanh %53 : vector<2x128xf32>
    %55 = arith.mulf %54, %28 : vector<2x128xf32>
    %56 = arith.addf %55, %33 : vector<2x128xf32>
    %57 = vector.extract_strided_slice %56 {offsets = [0, 0], sizes = [2, 32], strides = [1, 1]} : vector<2x128xf32> to vector<2x32xf32>
    %58 = vector.extract_strided_slice %56 {offsets = [0, 32], sizes = [2, 32], strides = [1, 1]} : vector<2x128xf32> to vector<2x32xf32>
    %59 = vector.extract_strided_slice %56 {offsets = [0, 64], sizes = [2, 32], strides = [1, 1]} : vector<2x128xf32> to vector<2x32xf32>
    %60 = vector.extract_strided_slice %56 {offsets = [0, 96], sizes = [2, 32], strides = [1, 1]} : vector<2x128xf32> to vector<2x32xf32>
    %61 = arith.mulf %58, %48 : vector<2x32xf32>
    %62 = arith.mulf %57, %59 : vector<2x32xf32>
    %63 = arith.addf %61, %62 : vector<2x32xf32>
    %64 = math.tanh %63 : vector<2x32xf32>
    %65 = arith.mulf %60, %64 : vector<2x32xf32>
    %66 = vector.extract_strided_slice %16 {offsets = [4, 0], sizes = [2, 128], strides = [1, 1]} : vector<16x128xf32> to vector<2x128xf32>
    %cst_18 = arith.constant dense<0.000000e+00> : vector<2x128xf32>
    %67 = tpu.matmul %65, %17, %cst_18 {dimension_numbers = #tpu.dot_dimension_numbers<[1], [0], [0], [1], [0, 0, 1, 1], [], []>} : vector<2x32xf32>, vector<32x128xf32>, vector<2x128xf32> -> vector<2x128xf32>
    %68 = arith.addf %66, %67 : vector<2x128xf32>
    %69 = math.tanh %68 : vector<2x128xf32>
    %70 = arith.mulf %69, %28 : vector<2x128xf32>
    %71 = arith.addf %70, %33 : vector<2x128xf32>
    %72 = vector.extract_strided_slice %71 {offsets = [0, 0], sizes = [2, 32], strides = [1, 1]} : vector<2x128xf32> to vector<2x32xf32>
    %73 = vector.extract_strided_slice %71 {offsets = [0, 32], sizes = [2, 32], strides = [1, 1]} : vector<2x128xf32> to vector<2x32xf32>
    %74 = vector.extract_strided_slice %71 {offsets = [0, 64], sizes = [2, 32], strides = [1, 1]} : vector<2x128xf32> to vector<2x32xf32>
    %75 = vector.extract_strided_slice %71 {offsets = [0, 96], sizes = [2, 32], strides = [1, 1]} : vector<2x128xf32> to vector<2x32xf32>
    %76 = arith.mulf %73, %63 : vector<2x32xf32>
    %77 = arith.mulf %72, %74 : vector<2x32xf32>
    %78 = arith.addf %76, %77 : vector<2x32xf32>
    %79 = math.tanh %78 : vector<2x32xf32>
    %80 = arith.mulf %75, %79 : vector<2x32xf32>
    %81 = vector.extract_strided_slice %16 {offsets = [6, 0], sizes = [2, 128], strides = [1, 1]} : vector<16x128xf32> to vector<2x128xf32>
    %cst_19 = arith.constant dense<0.000000e+00> : vector<2x128xf32>
    %82 = tpu.matmul %80, %17, %cst_19 {dimension_numbers = #tpu.dot_dimension_numbers<[1], [0], [0], [1], [0, 0, 1, 1], [], []>} : vector<2x32xf32>, vector<32x128xf32>, vector<2x128xf32> -> vector<2x128xf32>
    %83 = arith.addf %81, %82 : vector<2x128xf32>
    %84 = math.tanh %83 : vector<2x128xf32>
    %85 = arith.mulf %84, %28 : vector<2x128xf32>
    %86 = arith.addf %85, %33 : vector<2x128xf32>
    %87 = vector.extract_strided_slice %86 {offsets = [0, 0], sizes = [2, 32], strides = [1, 1]} : vector<2x128xf32> to vector<2x32xf32>
    %88 = vector.extract_strided_slice %86 {offsets = [0, 32], sizes = [2, 32], strides = [1, 1]} : vector<2x128xf32> to vector<2x32xf32>
    %89 = vector.extract_strided_slice %86 {offsets = [0, 64], sizes = [2, 32], strides = [1, 1]} : vector<2x128xf32> to vector<2x32xf32>
    %90 = vector.extract_strided_slice %86 {offsets = [0, 96], sizes = [2, 32], strides = [1, 1]} : vector<2x128xf32> to vector<2x32xf32>
    %91 = arith.mulf %88, %78 : vector<2x32xf32>
    %92 = arith.mulf %87, %89 : vector<2x32xf32>
    %93 = arith.addf %91, %92 : vector<2x32xf32>
    %94 = math.tanh %93 : vector<2x32xf32>
    %95 = arith.mulf %90, %94 : vector<2x32xf32>
    %96 = vector.extract_strided_slice %16 {offsets = [8, 0], sizes = [2, 128], strides = [1, 1]} : vector<16x128xf32> to vector<2x128xf32>
    %cst_20 = arith.constant dense<0.000000e+00> : vector<2x128xf32>
    %97 = tpu.matmul %95, %17, %cst_20 {dimension_numbers = #tpu.dot_dimension_numbers<[1], [0], [0], [1], [0, 0, 1, 1], [], []>} : vector<2x32xf32>, vector<32x128xf32>, vector<2x128xf32> -> vector<2x128xf32>
    %98 = arith.addf %96, %97 : vector<2x128xf32>
    %99 = math.tanh %98 : vector<2x128xf32>
    %100 = arith.mulf %99, %28 : vector<2x128xf32>
    %101 = arith.addf %100, %33 : vector<2x128xf32>
    %102 = vector.extract_strided_slice %101 {offsets = [0, 0], sizes = [2, 32], strides = [1, 1]} : vector<2x128xf32> to vector<2x32xf32>
    %103 = vector.extract_strided_slice %101 {offsets = [0, 32], sizes = [2, 32], strides = [1, 1]} : vector<2x128xf32> to vector<2x32xf32>
    %104 = vector.extract_strided_slice %101 {offsets = [0, 64], sizes = [2, 32], strides = [1, 1]} : vector<2x128xf32> to vector<2x32xf32>
    %105 = vector.extract_strided_slice %101 {offsets = [0, 96], sizes = [2, 32], strides = [1, 1]} : vector<2x128xf32> to vector<2x32xf32>
    %106 = arith.mulf %103, %93 : vector<2x32xf32>
    %107 = arith.mulf %102, %104 : vector<2x32xf32>
    %108 = arith.addf %106, %107 : vector<2x32xf32>
    %109 = math.tanh %108 : vector<2x32xf32>
    %110 = arith.mulf %105, %109 : vector<2x32xf32>
    %111 = vector.extract_strided_slice %16 {offsets = [10, 0], sizes = [2, 128], strides = [1, 1]} : vector<16x128xf32> to vector<2x128xf32>
    %cst_21 = arith.constant dense<0.000000e+00> : vector<2x128xf32>
    %112 = tpu.matmul %110, %17, %cst_21 {dimension_numbers = #tpu.dot_dimension_numbers<[1], [0], [0], [1], [0, 0, 1, 1], [], []>} : vector<2x32xf32>, vector<32x128xf32>, vector<2x128xf32> -> vector<2x128xf32>
    %113 = arith.addf %111, %112 : vector<2x128xf32>
    %114 = math.tanh %113 : vector<2x128xf32>
    %115 = arith.mulf %114, %28 : vector<2x128xf32>
    %116 = arith.addf %115, %33 : vector<2x128xf32>
    %117 = vector.extract_strided_slice %116 {offsets = [0, 0], sizes = [2, 32], strides = [1, 1]} : vector<2x128xf32> to vector<2x32xf32>
    %118 = vector.extract_strided_slice %116 {offsets = [0, 32], sizes = [2, 32], strides = [1, 1]} : vector<2x128xf32> to vector<2x32xf32>
    %119 = vector.extract_strided_slice %116 {offsets = [0, 64], sizes = [2, 32], strides = [1, 1]} : vector<2x128xf32> to vector<2x32xf32>
    %120 = vector.extract_strided_slice %116 {offsets = [0, 96], sizes = [2, 32], strides = [1, 1]} : vector<2x128xf32> to vector<2x32xf32>
    %121 = arith.mulf %118, %108 : vector<2x32xf32>
    %122 = arith.mulf %117, %119 : vector<2x32xf32>
    %123 = arith.addf %121, %122 : vector<2x32xf32>
    %124 = math.tanh %123 : vector<2x32xf32>
    %125 = arith.mulf %120, %124 : vector<2x32xf32>
    %126 = vector.extract_strided_slice %16 {offsets = [12, 0], sizes = [2, 128], strides = [1, 1]} : vector<16x128xf32> to vector<2x128xf32>
    %cst_22 = arith.constant dense<0.000000e+00> : vector<2x128xf32>
    %127 = tpu.matmul %125, %17, %cst_22 {dimension_numbers = #tpu.dot_dimension_numbers<[1], [0], [0], [1], [0, 0, 1, 1], [], []>} : vector<2x32xf32>, vector<32x128xf32>, vector<2x128xf32> -> vector<2x128xf32>
    %128 = arith.addf %126, %127 : vector<2x128xf32>
    %129 = math.tanh %128 : vector<2x128xf32>
    %130 = arith.mulf %129, %28 : vector<2x128xf32>
    %131 = arith.addf %130, %33 : vector<2x128xf32>
    %132 = vector.extract_strided_slice %131 {offsets = [0, 0], sizes = [2, 32], strides = [1, 1]} : vector<2x128xf32> to vector<2x32xf32>
    %133 = vector.extract_strided_slice %131 {offsets = [0, 32], sizes = [2, 32], strides = [1, 1]} : vector<2x128xf32> to vector<2x32xf32>
    %134 = vector.extract_strided_slice %131 {offsets = [0, 64], sizes = [2, 32], strides = [1, 1]} : vector<2x128xf32> to vector<2x32xf32>
    %135 = vector.extract_strided_slice %131 {offsets = [0, 96], sizes = [2, 32], strides = [1, 1]} : vector<2x128xf32> to vector<2x32xf32>
    %136 = arith.mulf %133, %123 : vector<2x32xf32>
    %137 = arith.mulf %132, %134 : vector<2x32xf32>
    %138 = arith.addf %136, %137 : vector<2x32xf32>
    %139 = math.tanh %138 : vector<2x32xf32>
    %140 = arith.mulf %135, %139 : vector<2x32xf32>
    %141 = vector.extract_strided_slice %16 {offsets = [14, 0], sizes = [2, 128], strides = [1, 1]} : vector<16x128xf32> to vector<2x128xf32>
    %cst_23 = arith.constant dense<0.000000e+00> : vector<2x128xf32>
    %142 = tpu.matmul %140, %17, %cst_23 {dimension_numbers = #tpu.dot_dimension_numbers<[1], [0], [0], [1], [0, 0, 1, 1], [], []>} : vector<2x32xf32>, vector<32x128xf32>, vector<2x128xf32> -> vector<2x128xf32>
    %143 = arith.addf %141, %142 : vector<2x128xf32>
    %144 = math.tanh %143 : vector<2x128xf32>
    %145 = arith.mulf %144, %28 : vector<2x128xf32>
    %146 = arith.addf %145, %33 : vector<2x128xf32>
    %147 = vector.extract_strided_slice %146 {offsets = [0, 0], sizes = [2, 32], strides = [1, 1]} : vector<2x128xf32> to vector<2x32xf32>
    %148 = vector.extract_strided_slice %146 {offsets = [0, 32], sizes = [2, 32], strides = [1, 1]} : vector<2x128xf32> to vector<2x32xf32>
    %149 = vector.extract_strided_slice %146 {offsets = [0, 64], sizes = [2, 32], strides = [1, 1]} : vector<2x128xf32> to vector<2x32xf32>
    %150 = arith.mulf %148, %138 : vector<2x32xf32>
    %151 = arith.mulf %147, %149 : vector<2x32xf32>
    %152 = arith.addf %150, %151 : vector<2x32xf32>
    %c0_i32_24 = arith.constant 0 : i32
    %153 = tpu.memref_slice %arg11[%c0_i32_24] : memref<2x!tpu.dma_semaphore, #tpu.memory_space<semaphore_mem>> -> memref<1x!tpu.dma_semaphore, #tpu.memory_space<semaphore_mem>>
    %154 = tpu.memref_squeeze %153 : memref<1x!tpu.dma_semaphore, #tpu.memory_space<semaphore_mem>> -> memref<!tpu.dma_semaphore, #tpu.memory_space<semaphore_mem>>
    tpu.wait_dma2 semaphore(%154 : memref<!tpu.dma_semaphore, #tpu.memory_space<semaphore_mem>>) src(%arg6 : memref<112x128xf32, #tpu.memory_space<any>>) dst(%arg9 : memref<112x128xf32, #tpu.memory_space<vmem>>)
    %c1_i32_25 = arith.constant 1 : i32
    %155 = tpu.memref_slice %arg11[%c1_i32_25] : memref<2x!tpu.dma_semaphore, #tpu.memory_space<semaphore_mem>> -> memref<1x!tpu.dma_semaphore, #tpu.memory_space<semaphore_mem>>
    %156 = tpu.memref_squeeze %155 : memref<1x!tpu.dma_semaphore, #tpu.memory_space<semaphore_mem>> -> memref<!tpu.dma_semaphore, #tpu.memory_space<semaphore_mem>>
    tpu.wait_dma2 semaphore(%156 : memref<!tpu.dma_semaphore, #tpu.memory_space<semaphore_mem>>) src(%arg7 : memref<8x128xf32, #tpu.memory_space<any>>) dst(%arg10 : memref<8x128xf32, #tpu.memory_space<vmem>>)
    %c0_26 = arith.constant 0 : index
    %c0_27 = arith.constant 0 : index
    %157 = vector.load %arg9[%c0_26, %c0_27] : memref<112x128xf32, #tpu.memory_space<vmem>>, vector<32x128xf32>
    %c32 = arith.constant 32 : index
    %c0_28 = arith.constant 0 : index
    %158 = vector.load %arg9[%c32, %c0_28] : memref<112x128xf32, #tpu.memory_space<vmem>>, vector<64x128xf32>
    %c96 = arith.constant 96 : index
    %c0_29 = arith.constant 0 : index
    %159 = vector.load %arg9[%c96, %c0_29] : memref<112x128xf32, #tpu.memory_space<vmem>>, vector<16x128xf32>
    %c0_30 = arith.constant 0 : index
    %c0_31 = arith.constant 0 : index
    %160 = vector.load %arg10[%c0_30, %c0_31] : memref<8x128xf32, #tpu.memory_space<vmem>>, vector<1x128xf32>
    %c1 = arith.constant 1 : index
    %c0_32 = arith.constant 0 : index
    %161 = vector.load %arg10[%c1, %c0_32] : memref<8x128xf32, #tpu.memory_space<vmem>>, vector<1x128xf32>
    %c2 = arith.constant 2 : index
    %c0_33 = arith.constant 0 : index
    %162 = vector.load %arg10[%c2, %c0_33] : memref<8x128xf32, #tpu.memory_space<vmem>>, vector<1x128xf32>
    %cst_34 = arith.constant dense<0.000000e+00> : vector<2x128xf32>
    %163 = tpu.matmul %152, %157, %cst_34 {dimension_numbers = #tpu.dot_dimension_numbers<[1], [0], [0], [1], [0, 0, 1, 1], [], []>} : vector<2x32xf32>, vector<32x128xf32>, vector<2x128xf32> -> vector<2x128xf32>
    %164 = vector.broadcast %160 : vector<1x128xf32> to vector<2x128xf32>
    %165 = arith.addf %163, %164 : vector<2x128xf32>
    %166 = arith.negf %165 : vector<2x128xf32>
    %167 = math.exp %166 : vector<2x128xf32>
    %cst_35 = arith.constant 1.000000e+00 : f32
    %168 = vector.broadcast %cst_35 : f32 to vector<2x128xf32>
    %169 = arith.addf %168, %167 : vector<2x128xf32>
    %170 = arith.divf %168, %169 : vector<2x128xf32>
    %171 = vector.extract_strided_slice %170 {offsets = [0, 0], sizes = [2, 64], strides = [1, 1]} : vector<2x128xf32> to vector<2x64xf32>
    %cst_36 = arith.constant dense<0.000000e+00> : vector<2x128xf32>
    %172 = tpu.matmul %171, %158, %cst_36 {dimension_numbers = #tpu.dot_dimension_numbers<[1], [0], [0], [1], [0, 0, 1, 1], [], []>} : vector<2x64xf32>, vector<64x128xf32>, vector<2x128xf32> -> vector<2x128xf32>
    %173 = vector.broadcast %161 : vector<1x128xf32> to vector<2x128xf32>
    %174 = arith.addf %172, %173 : vector<2x128xf32>
    %175 = arith.negf %174 : vector<2x128xf32>
    %176 = math.exp %175 : vector<2x128xf32>
    %cst_37 = arith.constant 1.000000e+00 : f32
    %177 = vector.broadcast %cst_37 : f32 to vector<2x128xf32>
    %178 = arith.addf %177, %176 : vector<2x128xf32>
    %179 = arith.divf %177, %178 : vector<2x128xf32>
    %180 = vector.extract_strided_slice %179 {offsets = [0, 0], sizes = [2, 16], strides = [1, 1]} : vector<2x128xf32> to vector<2x16xf32>
    %cst_38 = arith.constant dense<0.000000e+00> : vector<2x128xf32>
    %181 = tpu.matmul %180, %159, %cst_38 {dimension_numbers = #tpu.dot_dimension_numbers<[1], [0], [0], [1], [0, 0, 1, 1], [], []>} : vector<2x16xf32>, vector<16x128xf32>, vector<2x128xf32> -> vector<2x128xf32>
    %182 = vector.broadcast %162 : vector<1x128xf32> to vector<2x128xf32>
    %183 = arith.addf %181, %182 : vector<2x128xf32>
    %184 = vector.extract_strided_slice %183 {offsets = [0, 0], sizes = [2, 10], strides = [1, 1]} : vector<2x128xf32> to vector<2x10xf32>
    %c0_39 = arith.constant 0 : index
    %c0_40 = arith.constant 0 : index
    %185 = vector.load %arg8[%c0_39, %c0_40] : memref<2x10xf32, #tpu.memory_space<vmem>>, vector<2x10xf32>
    tpu.vector_store %arg8[%c0_39, %c0_40], %184 {strides = array<i32>} : memref<2x10xf32, #tpu.memory_space<vmem>>, vector<2x10xf32>,
    return
  }
  func.func @transform_0(%arg0: i32) -> (i32, i32) {
    %c0_i32 = arith.constant 0 : i32
    %c0_i32_0 = arith.constant 0 : i32
    %c0_i32_1 = arith.constant 0 : i32
    return %c0_i32, %c0_i32_0 : i32, i32
  }
  func.func @transform_1(%arg0: i32) -> (i32, i32) {
    %c0_i32 = arith.constant 0 : i32
    %c0_i32_0 = arith.constant 0 : i32
    %c0_i32_1 = arith.constant 0 : i32
    return %c0_i32, %c0_i32_0 : i32, i32
  }
  func.func @transform_2(%arg0: i32) -> (i32, i32) {
    %c0_i32 = arith.constant 0 : i32
    %c0_i32_0 = arith.constant 0 : i32
    %c0_i32_1 = arith.constant 0 : i32
    return %c0_i32, %c0_i32_0 : i32, i32
  }
  func.func @transform_3(%arg0: i32) -> (i32, i32) {
    %c0_i32 = arith.constant 0 : i32
    %c0_i32_0 = arith.constant 0 : i32
    %c0_i32_1 = arith.constant 0 : i32
    return %c0_i32, %c0_i32_0 : i32, i32
  }
  func.func @transform_4(%arg0: i32) -> (i32, i32) {
    %c0_i32 = arith.constant 0 : i32
    %c0_i32_0 = arith.constant 0 : i32
    %c0_i32_1 = arith.constant 0 : i32
    return %c0_i32, %c0_i32_0 : i32, i32
  }
  func.func @transform_7(%arg0: i32) -> (i32, i32) {
    %c0_i32 = arith.constant 0 : i32
    %c0_i32_0 = arith.constant 0 : i32
    %c0_i32_1 = arith.constant 0 : i32
    return %c0_i32, %c0_i32_0 : i32, i32
  }
}

</mosaic_0001>

<llo_original>
// kernel: rnn_classifier_forward.1
$region0: #{rnn_classifier_forward.1}
  #allocation0 [shape = 'u32[]', space=smem, size = 0x4, offset = 0x4, fixed_abs, tag = 'smem constant byte address 0x4 - core index']
  #allocation1 [shape = 'u32[72,128]{1,0:T(1,128)}', space=vmem, size = 0x9000, scoped, tag = 'internal scratch']
  #allocation2 [shape = 'f32[112,128]{1,0:T(8,128)}', space=vmem, size = 0xe000, scoped, tag = 'scratch operand']
  #allocation3 [shape = 'f32[8,128]{1,0:T(8,128)}', space=vmem, size = 0x1000, scoped, tag = 'scratch operand']
  #allocation4 [shape = 's32[2]{0}', space=sflag, size = 0x8, scoped, tag = 'scratch operand']
  #allocation7 [shape = 's32[]', space=sflag, size = 0x4, offset = 0, fixed_abs, tag = 'sflag constant byte address 0x0 - dummy sync flag']
  #allocation8 [shape = 's32[]', space=sflag, size = 0x4, offset = 0, fixed_abs, tag = 'sflag constant byte address 0x0 - dummy sync flag']
  #allocation9 [shape = 'u32[]', space=smem, size = 0x4, offset = 0x44, fixed_abs, tag = 'smem constant byte address 0x44 - assertion arg 0']
  #allocation10 [shape = 'u32[]', space=smem, size = 0x4, offset = 0x48, fixed_abs, tag = 'smem constant byte address 0x48 - assertion arg 1']
  #allocation11 [shape = 's32[]', space=sflag, size = 0x4, offset = 0, fixed_abs, tag = 'sflag constant byte address 0x0 - dummy sync flag']
  %s0 = inlined_call_operand.vmem [shape: s32[16,1], index: 0, kind: input, shape index: {}]
  %s1 = inlined_call_operand.vmem [shape: f32[50,16], index: 1, kind: input, shape index: {}]
  %s2 = inlined_call_operand.vmem [shape: f32[16,128], index: 2, kind: input, shape index: {}]
  %s3 = inlined_call_operand.vmem [shape: f32[32,128], index: 3, kind: input, shape index: {}]
  %s4 = inlined_call_operand.vmem [shape: f32[1,128], index: 4, kind: input, shape index: {}]
  %s5 = inlined_call_operand.hbm [shape: f32[112,128], index: 5, kind: input, shape index: {}]
  %s6 = inlined_call_operand.vmem [shape: f32[8,128], index: 6, kind: input, shape index: {}]
  %s7 = inlined_call_operand.hbm [shape: f32[2,10], index: 7, kind: output, shape index: {}]
  %s8 = sld [smem:[#allocation0]]
  $region68: #{rnn_classifier_forward.1} parent=0
    _
  %s10 = ssub.s32 1, %s8
  %s11 = scalar_select 0, %s10, %s8
  $region1: #{rnn_classifier_forward.1} parent=0
    #allocation5 [shape = 'u8[1024]{0}', space=vmem, size = 0x400, scoped, tag = 'output window, operand 0, single buffered']
    #allocation6 [shape = 's32[1]{0}', space=sflag, size = 0x4, scoped, tag = 'scoped memory for rnn_classifier_forward.1']
    %12 = vsyncpa [#allocation6], 0
    // Predicated region
    $region2: #{rnn_classifier_forward.1} parent=1 // pred_check
      _
    $region3: #{rnn_classifier_forward.1} parent=1 // pred_check_branch
      %14 = sbr.rel (0) target = $region5
    $region4: #{rnn_classifier_forward.1} parent=1 // pred_region
      _
    $region5: #{rnn_classifier_forward.1} parent=1 // pred_fallthru
      _
    // Predicated region
    $region6: #{rnn_classifier_forward.1} parent=1 // pred_check
      _
    $region7: #{rnn_classifier_forward.1} parent=1 // pred_check_branch
      %16 = sbr.rel (0) target = $region9
    $region8: #{rnn_classifier_forward.1} parent=1 // pred_region
      _
    $region9: #{rnn_classifier_forward.1} parent=1 // pred_fallthru
      _
    // Predicated region
    $region10: #{rnn_classifier_forward.1} parent=1 // pred_check
      _
    $region11: #{rnn_classifier_forward.1} parent=1 // pred_check_branch
      %18 = sbr.rel (0) target = $region13
    $region12: #{rnn_classifier_forward.1} parent=1 // pred_region
      _
    $region13: #{rnn_classifier_forward.1} parent=1 // pred_fallthru
      _
    // Predicated region
    $region14: #{rnn_classifier_forward.1} parent=1 // pred_check
      _
    $region15: #{rnn_classifier_forward.1} parent=1 // pred_check_branch
      %20 = sbr.rel (0) target = $region17
    $region16: #{rnn_classifier_forward.1} parent=1 // pred_region
      _
    $region17: #{rnn_classifier_forward.1} parent=1 // pred_fallthru
      _
    // Predicated region
    $region18: #{rnn_classifier_forward.1} parent=1 // pred_check
      _
    $region19: #{rnn_classifier_forward.1} parent=1 // pred_check_branch
      %22 = sbr.rel (0) target = $region21
    $region20: #{rnn_classifier_forward.1} parent=1 // pred_region
      _
    $region21: #{rnn_classifier_forward.1} parent=1 // pred_fallthru
      _
    // Predicated region
    $region22: #{rnn_classifier_forward.1} parent=1 // pred_check
      _
    $region23: #{rnn_classifier_forward.1} parent=1 // pred_check_branch
      %24 = sbr.rel target = $region25
    $region24: #{rnn_classifier_forward.1} parent=1 // pred_region
      %25 = sst [smem:[#allocation9]] [#allocation8]
      %26 = sst [smem:[#allocation10]] [#allocation7]
    $region25: #{rnn_classifier_forward.1} parent=1 // pred_fallthru
      _
    %28 = shalt.err (0)
    %s30 = sshll.u32 %s5, 4
    %s31 = int_to_ptr.hbm [resolvable:$true] %s30
    %s32 = sshll.u32 [#allocation2], 4
    %s33 = int_to_ptr.vmem [resolvable:$true] %s32
    %35 = dma.hbm_to_vmem [thread:$0]  %s31, 1792, %s33, [#allocation4]
    %s36 = scalar_lea.sflag [#allocation4], 1
    // Predicated region
    $region26: #{rnn_classifier_forward.1} parent=1 // pred_check
      _
    $region27: #{rnn_classifier_forward.1} parent=1 // pred_check_branch
      %38 = sbr.rel (0) target = $region29
    $region28: #{rnn_classifier_forward.1} parent=1 // pred_region
      // Predicated region
      $region41: #{rnn_classifier_forward.1} parent=28 // pred_check
        _
      $region42: #{rnn_classifier_forward.1} parent=28 // pred_check_branch
        %54 = sbr.rel (0) target = $region44
      $region43: #{rnn_classifier_forward.1} parent=28 // pred_region
        loop: start=0, step=1, limit=1
        $region45: #{rnn_classifier_forward.1} parent=43 // loop_pre_header
          _
        $region46: #{rnn_classifier_forward.1} parent=43 // loop_header
          %s56 = sphi 0, %s60
          %p57 = scmp.ge.s32.totalorder %s56, 1
          %s61 = sphi %s6, %s6
          %s62 = sphi [#allocation3], [#allocation3]
        $region47: #{rnn_classifier_forward.1} parent=43 // loop_header_branch
          %59 = sbr.rel (%p57) target = $region51
        $region48: #{rnn_classifier_forward.1} parent=43 // loop_body
          %v63 = vld [vmem:[%s61] sm:$0xff]
          %64 = vst [vmem:[%s62] sm:$0xff] %v63
        $region49: #{rnn_classifier_forward.1} parent=43 // loop_footer
          %s60 = sadd.s32 1, %s56
        $region50: #{rnn_classifier_forward.1} parent=43 // loop_footer_branch
          %55 = sbr.rel target = $region46
        $region51: #{rnn_classifier_forward.1} parent=43 // loop_exit
          _
      $region44: #{rnn_classifier_forward.1} parent=28 // pred_fallthru
        _
      // Predicated region
      $region52: #{rnn_classifier_forward.1} parent=28 // pred_check
        _
      $region53: #{rnn_classifier_forward.1} parent=28 // pred_check_branch
        %66 = sbr.rel target = $region55
      $region54: #{rnn_classifier_forward.1} parent=28 // pred_region
        _
      $region55: #{rnn_classifier_forward.1} parent=28 // pred_fallthru
        _
    $region29: #{rnn_classifier_forward.1} parent=1 // pred_fallthru
      _
    // Predicated region
    $region30: #{rnn_classifier_forward.1} parent=1 // pred_check
      _
    $region31: #{rnn_classifier_forward.1} parent=1 // pred_check_branch
      %40 = sbr.rel target = $region33
    $region32: #{rnn_classifier_forward.1} parent=1 // pred_region
      %s42 = ssub.s32 256, 1
      loop: start=0, step=1, limit=1
      $region34: #{rnn_classifier_forward.1} parent=32 // loop_pre_header
        _
      $region35: #{rnn_classifier_forward.1} parent=32 // loop_header
        %s44 = sphi 0, %s48
        %p45 = scmp.ge.s32.totalorder %s44, 1
        %s49 = sphi %s6, %s6
        %s50 = sphi [#allocation3], [#allocation3]
      $region36: #{rnn_classifier_forward.1} parent=32 // loop_header_branch
        %47 = sbr.rel (%p45) target = $region40
      $region37: #{rnn_classifier_forward.1} parent=32 // loop_body
        %v51 = vld [vmem:[%s49] sm:%s42]
        %52 = vst [vmem:[%s50] sm:%s42] %v51
      $region38: #{rnn_classifier_forward.1} parent=32 // loop_footer
        %s48 = sadd.s32 1, %s44
      $region39: #{rnn_classifier_forward.1} parent=32 // loop_footer_branch
        %43 = sbr.rel target = $region35
      $region40: #{rnn_classifier_forward.1} parent=32 // loop_exit
        _
    $region33: #{rnn_classifier_forward.1} parent=1 // pred_fallthru
      _
    // Predicated region
    $region56: #{rnn_classifier_forward.1} parent=1 // pred_check
      _
    $region57: #{rnn_classifier_forward.1} parent=1 // pred_check_branch
      %69 = sbr.rel (0) target = $region59
    $region58: #{rnn_classifier_forward.1} parent=1 // pred_region
      %70 = vsyncadd %s36, 128
    $region59: #{rnn_classifier_forward.1} parent=1 // pred_fallthru
      _
    %v71 = vld [vmem:[%s0] sm:$0xff]
    %v72 = vld [vmem:[%s0 + $0x8] sm:$0xff]
    %v73 = vlaneseq
    %v74 = vand.u32 %v73, 127
    %75 = vset.pattern.permute.xlu0 0
    %76 = vperm.xlu0 %75, %v71
    %v77 = vpop.permute.xlu0 %76
    %78 = vset.pattern.permute.xlu0 0
    %79 = vperm.xlu0 %78, %v72
    %v80 = vpop.permute.xlu0 %79
    %vm81 = vcmp.eq.s32.totalorder %v74, %v77
    %vm82 = vcmp.eq.s32.totalorder %v74, %v80
    %v83 = vsel %vm81, 1, 0
    %v84 = vsel %vm82, 1, 0
    %v85 = vcvt.s32.f32 %v83
    %v86 = vcvt.s32.f32 %v84
    %v87 = vld [vmem:[%s1] sm:$0xff]
    %v88 = vld [vmem:[%s1 + $0x8] sm:$0xff]
    %v89 = vld [vmem:[%s1 + $0x10] sm:$0xff]
    %v90 = vld [vmem:[%s1 + $0x18] sm:$0xff]
    %v91 = vld [vmem:[%s1 + $0x20] sm:$0xff]
    %v92 = vld [vmem:[%s1 + $0x28] sm:$0xff]
    %v93 = vld [vmem:[%s1 + $0x30] sm:$0x3]
    %vm94 = vcmask 408576
    %v96 = vsel %vm94, %v85, 0
    %v99 = vsel %vm94, %v86, 0
    %vm101 = vcmask 1041408
    %v103 = vsel %vm101, %v93, 0
    %105 = vmatpush.msra.mxu0 0.0
    %106 = vmatpush.msra.mxu0 0.0
    %107 = vmatpush.msra.mxu0 0.0
    %108 = vmatpush.msra.mxu0 0.0
    %109 = vmatpush.msra.mxu0 0.0
    %110 = vmatpush.msra.mxu0 0.0
    %111 = vmatpush.msra.mxu0 0.0
    %112 = vmatpush.msra.mxu0 0.0
    %113 = vmatpush.msra.mxu0 0.0
    %114 = vmatpush.msra.mxu0 %v103
    %115 = vmatpush.msra.mxu0 %v92
    %116 = vmatpush.msra.mxu0 %v91
    %117 = vmatpush.msra.mxu0 %v90
    %118 = vmatpush.msra.mxu0 %v89
    %119 = vmatpush.msra.mxu0 %v88
    %120 = vmatpush.msra.mxu0 %v87
    %121 = vmatmul.f32.gmra.mxu0 %v96
    %v122 = vpop.f32.mrf.mxu0
    %v123 = vadd.f32 0.0, %v122
    %124 = vmatmul.f32.gmra.mxu0 %v99
    %v125 = vpop.f32.mrf.mxu0
    %v126 = vadd.f32 0.0, %v125
    %127 = vdwg.mxu0
    %v128 = vld [vmem:[%s2] sm:$0xff]
    %v129 = vld [vmem:[%s2 + $0x8] sm:$0xff]
    %v130 = vld [vmem:[%s4] sm:$0x1]
    %v132 = vperm.slane %v130, 0
    %vm134 = vcmask 130048
    %v136 = vsel %vm134, %v123, 0
    %v139 = vsel %vm134, %v126, 0
    %141 = vmatpush.msra.mxu0 0.0
    %142 = vmatpush.msra.mxu0 0.0
    %143 = vmatpush.msra.mxu0 0.0
    %144 = vmatpush.msra.mxu0 0.0
    %145 = vmatpush.msra.mxu0 0.0
    %146 = vmatpush.msra.mxu0 0.0
    %147 = vmatpush.msra.mxu0 0.0
    %148 = vmatpush.msra.mxu0 0.0
    %149 = vmatpush.msra.mxu0 0.0
    %150 = vmatpush.msra.mxu0 0.0
    %151 = vmatpush.msra.mxu0 0.0
    %152 = vmatpush.msra.mxu0 0.0
    %153 = vmatpush.msra.mxu0 0.0
    %154 = vmatpush.msra.mxu0 0.0
    %155 = vmatpush.msra.mxu0 %v129
    %156 = vmatpush.msra.mxu0 %v128
    %157 = vmatmul.f32.gmra.mxu0 %v136
    %v158 = vpop.f32.mrf.mxu0
    %v159 = vadd.f32 %v132, %v158
    %160 = vmatmul.f32.gmra.mxu0 %v139
    %v161 = vpop.f32.mrf.mxu0
    %v162 = vadd.f32 %v132, %v161
    %163 = vdwg.mxu0
    %v164 = vld [vmem:[%s3] sm:$0xff]
    %v165 = vld [vmem:[%s3 + $0x8] sm:$0xff]
    %v166 = vld [vmem:[%s3 + $0x10] sm:$0xff]
    %v167 = vld [vmem:[%s3 + $0x18] sm:$0xff]
    %vm168 = vcmp.ge.s32.totalorder %v74, 64
    %vm169 = vcmp.lt.s32.totalorder %v74, 96
    %vm170 = vmand %vm168, %vm169
    %v171 = vsel %vm170, 1.0, 0.5
    %v172 = vsel %vm170, 0.0, 0.5
    %vm173 = vcmask 261120
    %v175 = vsel %vm173, 0.0, 0
    %177 = vmatpush.msra.mxu0 0.0
    %178 = vmatpush.msra.mxu0 0.0
    %179 = vmatpush.msra.mxu0 0.0
    %180 = vmatpush.msra.mxu0 0.0
    %181 = vmatpush.msra.mxu0 0.0
    %182 = vmatpush.msra.mxu0 0.0
    %183 = vmatpush.msra.mxu0 0.0
    %184 = vmatpush.msra.mxu0 0.0
    %185 = vmatpush.msra.mxu0 0.0
    %186 = vmatpush.msra.mxu0 0.0
    %187 = vmatpush.msra.mxu0 0.0
    %188 = vmatpush.msra.mxu0 0.0
    %189 = vmatpush.msra.mxu0 %v167
    %190 = vmatpush.msra.mxu0 %v166
    %191 = vmatpush.msra.mxu0 %v165
    %192 = vmatpush.msra.mxu0 %v164
    %193 = vmatmul.f32.gmra.mxu0 %v175
    %v194 = vpop.f32.mrf.mxu0
    %v195 = vadd.f32 0.0, %v194
    %196 = vdwg.mxu0
    %v197 = vadd.f32 %v159, %v195
    %v198 = vtanh.pop %v197
    %v199 = vmul.f32 %v198, %v171
    %v200 = vadd.f32 %v199, %v172
    %v201 = vmul.f32 %v200, 0.0
    %203 = vrot.lane.b32.xlu0 %v200, 64
    %v204 = vpop.permute.xlu0 %203
    %v206 = vmul.f32 %v200, %v204
    %208 = vrot.lane.b32.xlu0 %v206, 32
    %v209 = vpop.permute.xlu0 %208
    %v211 = vadd.f32 %v201, %v209
    %v212 = vtanh.pop %v211
    %214 = vrot.lane.b32.xlu0 %v212, 64
    %v215 = vpop.permute.xlu0 %214
    %v217 = vmul.f32 %v200, %v215
    %219 = vrot.lane.b32.xlu0 %v217, 32
    %v220 = vpop.permute.xlu0 %219
    %v221 = vsel %vm173, %v220, 0
    %223 = vmatpush.msra.mxu0 0.0
    %224 = vmatpush.msra.mxu0 0.0
    %225 = vmatpush.msra.mxu0 0.0
    %226 = vmatpush.msra.mxu0 0.0
    %227 = vmatpush.msra.mxu0 0.0
    %228 = vmatpush.msra.mxu0 0.0
    %229 = vmatpush.msra.mxu0 0.0
    %230 = vmatpush.msra.mxu0 0.0
    %231 = vmatpush.msra.mxu0 0.0
    %232 = vmatpush.msra.mxu0 0.0
    %233 = vmatpush.msra.mxu0 0.0
    %234 = vmatpush.msra.mxu0 0.0
    %235 = vmatpush.msra.mxu0 %v167
    %236 = vmatpush.msra.mxu0 %v166
    %237 = vmatpush.msra.mxu0 %v165
    %238 = vmatpush.msra.mxu0 %v164
    %239 = vmatmul.f32.gmra.mxu0 %v221
    %v240 = vpop.f32.mrf.mxu0
    %v241 = vadd.f32 0.0, %v240
    %242 = vdwg.mxu0
    %v244 = vrot.slane %v241, 6
    %v246 = vadd.f32 %v159, %v244
    %v247 = vtanh.pop %v246
    %v248 = vmul.f32 %v247, %v171
    %v249 = vadd.f32 %v248, %v172
    %v251 = vrot.slane %v211, 6
    %v253 = vmul.f32 %v249, %v251
    %255 = vrot.lane.b32.xlu0 %v249, 64
    %v256 = vpop.permute.xlu0 %255
    %v258 = vmul.f32 %v249, %v256
    %260 = vrot.lane.b32.xlu0 %v258, 32
    %v261 = vpop.permute.xlu0 %260
    %v263 = vadd.f32 %v253, %v261
    %v264 = vtanh.pop %v263
    %266 = vrot.lane.b32.xlu0 %v264, 64
    %v267 = vpop.permute.xlu0 %266
    %v269 = vmul.f32 %v249, %v267
    %v271 = vrot.slane %v269, 2
    %272 = vrot.lane.b32.xlu0 %v271, 32
    %v273 = vpop.permute.xlu0 %272
    %v274 = vsel %vm173, %v273, 0
    %276 = vmatpush.msra.mxu0 0.0
    %277 = vmatpush.msra.mxu0 0.0
    %278 = vmatpush.msra.mxu0 0.0
    %279 = vmatpush.msra.mxu0 0.0
    %280 = vmatpush.msra.mxu0 0.0
    %281 = vmatpush.msra.mxu0 0.0
    %282 = vmatpush.msra.mxu0 0.0
    %283 = vmatpush.msra.mxu0 0.0
    %284 = vmatpush.msra.mxu0 0.0
    %285 = vmatpush.msra.mxu0 0.0
    %286 = vmatpush.msra.mxu0 0.0
    %287 = vmatpush.msra.mxu0 0.0
    %288 = vmatpush.msra.mxu0 %v167
    %289 = vmatpush.msra.mxu0 %v166
    %290 = vmatpush.msra.mxu0 %v165
    %291 = vmatpush.msra.mxu0 %v164
    %292 = vmatmul.f32.gmra.mxu0 %v274
    %v293 = vpop.f32.mrf.mxu0
    %v294 = vadd.f32 0.0, %v293
    %295 = vdwg.mxu0
    %v297 = vrot.slane %v294, 4
    %v299 = vadd.f32 %v159, %v297
    %v300 = vtanh.pop %v299
    %v301 = vmul.f32 %v300, %v171
    %v302 = vadd.f32 %v301, %v172
    %v304 = vrot.slane %v263, 6
    %v306 = vmul.f32 %v302, %v304
    %308 = vrot.lane.b32.xlu0 %v302, 64
    %v309 = vpop.permute.xlu0 %308
    %v311 = vmul.f32 %v302, %v309
    %313 = vrot.lane.b32.xlu0 %v311, 32
    %v314 = vpop.permute.xlu0 %313
    %v316 = vadd.f32 %v306, %v314
    %v317 = vtanh.pop %v316
    %319 = vrot.lane.b32.xlu0 %v317, 64
    %v320 = vpop.permute.xlu0 %319
    %v322 = vmul.f32 %v302, %v320
    %v324 = vrot.slane %v322, 4
    %325 = vrot.lane.b32.xlu0 %v324, 32
    %v326 = vpop.permute.xlu0 %325
    %v327 = vsel %vm173, %v326, 0
    %329 = vmatpush.msra.mxu0 0.0
    %330 = vmatpush.msra.mxu0 0.0
    %331 = vmatpush.msra.mxu0 0.0
    %332 = vmatpush.msra.mxu0 0.0
    %333 = vmatpush.msra.mxu0 0.0
    %334 = vmatpush.msra.mxu0 0.0
    %335 = vmatpush.msra.mxu0 0.0
    %336 = vmatpush.msra.mxu0 0.0
    %337 = vmatpush.msra.mxu0 0.0
    %338 = vmatpush.msra.mxu0 0.0
    %339 = vmatpush.msra.mxu0 0.0
    %340 = vmatpush.msra.mxu0 0.0
    %341 = vmatpush.msra.mxu0 %v167
    %342 = vmatpush.msra.mxu0 %v166
    %343 = vmatpush.msra.mxu0 %v165
    %344 = vmatpush.msra.mxu0 %v164
    %345 = vmatmul.f32.gmra.mxu0 %v327
    %v346 = vpop.f32.mrf.mxu0
    %v347 = vadd.f32 0.0, %v346
    %348 = vdwg.mxu0
    %v350 = vrot.slane %v347, 2
    %v352 = vadd.f32 %v159, %v350
    %v353 = vtanh.pop %v352
    %v354 = vmul.f32 %v353, %v171
    %v355 = vadd.f32 %v354, %v172
    %v357 = vrot.slane %v316, 6
    %v359 = vmul.f32 %v355, %v357
    %361 = vrot.lane.b32.xlu0 %v355, 64
    %v362 = vpop.permute.xlu0 %361
    %v364 = vmul.f32 %v355, %v362
    %366 = vrot.lane.b32.xlu0 %v364, 32
    %v367 = vpop.permute.xlu0 %366
    %v369 = vadd.f32 %v359, %v367
    %v370 = vtanh.pop %v369
    %372 = vrot.lane.b32.xlu0 %v370, 64
    %v373 = vpop.permute.xlu0 %372
    %v375 = vmul.f32 %v355, %v373
    %v377 = vrot.slane %v375, 6
    %378 = vrot.lane.b32.xlu0 %v377, 32
    %v379 = vpop.permute.xlu0 %378
    %v380 = vsel %vm173, %v379, 0
    %382 = vmatpush.msra.mxu0 0.0
    %383 = vmatpush.msra.mxu0 0.0
    %384 = vmatpush.msra.mxu0 0.0
    %385 = vmatpush.msra.mxu0 0.0
    %386 = vmatpush.msra.mxu0 0.0
    %387 = vmatpush.msra.mxu0 0.0
    %388 = vmatpush.msra.mxu0 0.0
    %389 = vmatpush.msra.mxu0 0.0
    %390 = vmatpush.msra.mxu0 0.0
    %391 = vmatpush.msra.mxu0 0.0
    %392 = vmatpush.msra.mxu0 0.0
    %393 = vmatpush.msra.mxu0 0.0
    %394 = vmatpush.msra.mxu0 %v167
    %395 = vmatpush.msra.mxu0 %v166
    %396 = vmatpush.msra.mxu0 %v165
    %397 = vmatpush.msra.mxu0 %v164
    %398 = vmatmul.f32.gmra.mxu0 %v380
    %v399 = vpop.f32.mrf.mxu0
    %v400 = vadd.f32 0.0, %v399
    %401 = vdwg.mxu0
    %v402 = vadd.f32 %v162, %v400
    %v403 = vtanh.pop %v402
    %v404 = vmul.f32 %v403, %v171
    %v405 = vadd.f32 %v404, %v172
    %v407 = vrot.slane %v369, 6
    %v409 = vmul.f32 %v405, %v407
    %411 = vrot.lane.b32.xlu0 %v405, 64
    %v412 = vpop.permute.xlu0 %411
    %v414 = vmul.f32 %v405, %v412
    %416 = vrot.lane.b32.xlu0 %v414, 32
    %v417 = vpop.permute.xlu0 %416
    %v419 = vadd.f32 %v409, %v417
    %v420 = vtanh.pop %v419
    %422 = vrot.lane.b32.xlu0 %v420, 64
    %v423 = vpop.permute.xlu0 %422
    %v425 = vmul.f32 %v405, %v423
    %427 = vrot.lane.b32.xlu0 %v425, 32
    %v428 = vpop.permute.xlu0 %427
    %v429 = vsel %vm173, %v428, 0
    %431 = vmatpush.msra.mxu0 0.0
    %432 = vmatpush.msra.mxu0 0.0
    %433 = vmatpush.msra.mxu0 0.0
    %434 = vmatpush.msra.mxu0 0.0
    %435 = vmatpush.msra.mxu0 0.0
    %436 = vmatpush.msra.mxu0 0.0
    %437 = vmatpush.msra.mxu0 0.0
    %438 = vmatpush.msra.mxu0 0.0
    %439 = vmatpush.msra.mxu0 0.0
    %440 = vmatpush.msra.mxu0 0.0
    %441 = vmatpush.msra.mxu0 0.0
    %442 = vmatpush.msra.mxu0 0.0
    %443 = vmatpush.msra.mxu0 %v167
    %444 = vmatpush.msra.mxu0 %v166
    %445 = vmatpush.msra.mxu0 %v165
    %446 = vmatpush.msra.mxu0 %v164
    %447 = vmatmul.f32.gmra.mxu0 %v429
    %v448 = vpop.f32.mrf.mxu0
    %v449 = vadd.f32 0.0, %v448
    %450 = vdwg.mxu0
    %v452 = vrot.slane %v449, 6
    %v454 = vadd.f32 %v162, %v452
    %v455 = vtanh.pop %v454
    %v456 = vmul.f32 %v455, %v171
    %v457 = vadd.f32 %v456, %v172
    %v459 = vrot.slane %v419, 6
    %v461 = vmul.f32 %v457, %v459
    %463 = vrot.lane.b32.xlu0 %v457, 64
    %v464 = vpop.permute.xlu0 %463
    %v466 = vmul.f32 %v457, %v464
    %468 = vrot.lane.b32.xlu0 %v466, 32
    %v469 = vpop.permute.xlu0 %468
    %v471 = vadd.f32 %v461, %v469
    %v472 = vtanh.pop %v471
    %474 = vrot.lane.b32.xlu0 %v472, 64
    %v475 = vpop.permute.xlu0 %474
    %v477 = vmul.f32 %v457, %v475
    %v479 = vrot.slane %v477, 2
    %480 = vrot.lane.b32.xlu0 %v479, 32
    %v481 = vpop.permute.xlu0 %480
    %v482 = vsel %vm173, %v481, 0
    %484 = vmatpush.msra.mxu0 0.0
    %485 = vmatpush.msra.mxu0 0.0
    %486 = vmatpush.msra.mxu0 0.0
    %487 = vmatpush.msra.mxu0 0.0
    %488 = vmatpush.msra.mxu0 0.0
    %489 = vmatpush.msra.mxu0 0.0
    %490 = vmatpush.msra.mxu0 0.0
    %491 = vmatpush.msra.mxu0 0.0
    %492 = vmatpush.msra.mxu0 0.0
    %493 = vmatpush.msra.mxu0 0.0
    %494 = vmatpush.msra.mxu0 0.0
    %495 = vmatpush.msra.mxu0 0.0
    %496 = vmatpush.msra.mxu0 %v167
    %497 = vmatpush.msra.mxu0 %v166
    %498 = vmatpush.msra.mxu0 %v165
    %499 = vmatpush.msra.mxu0 %v164
    %500 = vmatmul.f32.gmra.mxu0 %v482
    %v501 = vpop.f32.mrf.mxu0
    %v502 = vadd.f32 0.0, %v501
    %503 = vdwg.mxu0
    %v505 = vrot.slane %v502, 4
    %v507 = vadd.f32 %v162, %v505
    %v508 = vtanh.pop %v507
    %v509 = vmul.f32 %v508, %v171
    %v510 = vadd.f32 %v509, %v172
    %v512 = vrot.slane %v471, 6
    %v514 = vmul.f32 %v510, %v512
    %516 = vrot.lane.b32.xlu0 %v510, 64
    %v517 = vpop.permute.xlu0 %516
    %v519 = vmul.f32 %v510, %v517
    %521 = vrot.lane.b32.xlu0 %v519, 32
    %v522 = vpop.permute.xlu0 %521
    %v524 = vadd.f32 %v514, %v522
    %v525 = vtanh.pop %v524
    %527 = vrot.lane.b32.xlu0 %v525, 64
    %v528 = vpop.permute.xlu0 %527
    %v530 = vmul.f32 %v510, %v528
    %v532 = vrot.slane %v530, 4
    %533 = vrot.lane.b32.xlu0 %v532, 32
    %v534 = vpop.permute.xlu0 %533
    %v535 = vsel %vm173, %v534, 0
    %537 = vmatpush.msra.mxu0 0.0
    %538 = vmatpush.msra.mxu0 0.0
    %539 = vmatpush.msra.mxu0 0.0
    %540 = vmatpush.msra.mxu0 0.0
    %541 = vmatpush.msra.mxu0 0.0
    %542 = vmatpush.msra.mxu0 0.0
    %543 = vmatpush.msra.mxu0 0.0
    %544 = vmatpush.msra.mxu0 0.0
    %545 = vmatpush.msra.mxu0 0.0
    %546 = vmatpush.msra.mxu0 0.0
    %547 = vmatpush.msra.mxu0 0.0
    %548 = vmatpush.msra.mxu0 0.0
    %549 = vmatpush.msra.mxu0 %v167
    %550 = vmatpush.msra.mxu0 %v166
    %551 = vmatpush.msra.mxu0 %v165
    %552 = vmatpush.msra.mxu0 %v164
    %553 = vmatmul.f32.gmra.mxu0 %v535
    %v554 = vpop.f32.mrf.mxu0
    %v555 = vadd.f32 0.0, %v554
    %556 = vdwg.mxu0
    %v558 = vrot.slane %v555, 2
    %v560 = vadd.f32 %v162, %v558
    %v561 = vtanh.pop %v560
    %v562 = vmul.f32 %v561, %v171
    %v563 = vadd.f32 %v562, %v172
    %v565 = vrot.slane %v524, 6
    %v567 = vmul.f32 %v563, %v565
    %569 = vrot.lane.b32.xlu0 %v563, 64
    %v570 = vpop.permute.xlu0 %569
    %v572 = vmul.f32 %v563, %v570
    %574 = vrot.lane.b32.xlu0 %v572, 32
    %v575 = vpop.permute.xlu0 %574
    %v577 = vadd.f32 %v567, %v575
    %s578 = smul.u32 112, 1
    %s579 = sshll.u32 %s578, 4
    %580 = dma.done [#allocation4], %s579
    %s581 = smul.u32 8, 1
    %s582 = sshll.u32 %s581, 4
    %583 = dma.done %s36, %s582
    %v584 = vld [vmem:[#allocation2] sm:$0xff]
    %v585 = vld [vmem:[#allocation2 + $0x8] sm:$0xff]
    %v586 = vld [vmem:[#allocation2 + $0x10] sm:$0xff]
    %v587 = vld [vmem:[#allocation2 + $0x18] sm:$0xff]
    %v588 = vld [vmem:[#allocation2 + $0x20] sm:$0xff]
    %v589 = vld [vmem:[#allocation2 + $0x28] sm:$0xff]
    %v590 = vld [vmem:[#allocation2 + $0x30] sm:$0xff]
    %v591 = vld [vmem:[#allocation2 + $0x38] sm:$0xff]
    %v592 = vld [vmem:[#allocation2 + $0x40] sm:$0xff]
    %v593 = vld [vmem:[#allocation2 + $0x48] sm:$0xff]
    %v594 = vld [vmem:[#allocation2 + $0x50] sm:$0xff]
    %v595 = vld [vmem:[#allocation2 + $0x58] sm:$0xff]
    %v596 = vld [vmem:[#allocation2 + $0x60] sm:$0xff]
    %v597 = vld [vmem:[#allocation2 + $0x68] sm:$0xff]
    %v598 = vld [vmem:[#allocation3] sm:$0x1]
    %v599 = vld [vmem:[#allocation3 + $0x1] sm:$0x1]
    %v600 = vld [vmem:[#allocation3 + $0x2] sm:$0x1]
    %v601 = vperm.slane %v598, 0
    %v603 = vrot.slane %v577, 6
    %604 = vrot.lane.b32.xlu0 %v603, 96
    %v605 = vpop.permute.xlu0 %604
    %v606 = vsel %vm173, %v605, 0
    %608 = vmatpush.msra.mxu0 0.0
    %609 = vmatpush.msra.mxu0 0.0
    %610 = vmatpush.msra.mxu0 0.0
    %611 = vmatpush.msra.mxu0 0.0
    %612 = vmatpush.msra.mxu0 0.0
    %613 = vmatpush.msra.mxu0 0.0
    %614 = vmatpush.msra.mxu0 0.0
    %615 = vmatpush.msra.mxu0 0.0
    %616 = vmatpush.msra.mxu0 0.0
    %617 = vmatpush.msra.mxu0 0.0
    %618 = vmatpush.msra.mxu0 0.0
    %619 = vmatpush.msra.mxu0 0.0
    %620 = vmatpush.msra.mxu0 %v587
    %621 = vmatpush.msra.mxu0 %v586
    %622 = vmatpush.msra.mxu0 %v585
    %623 = vmatpush.msra.mxu0 %v584
    %624 = vmatmul.f32.gmra.mxu0 %v606
    %v625 = vpop.f32.mrf.mxu0
    %v626 = vadd.f32 %v601, %v625
    %627 = vdwg.mxu0
    %v628 = vxor.u32 %v626, 2147483648
    %v629 = vmul.f32 %v628, 1.442695
    %v630 = vpow.pop %v629
    %v631 = vadd.f32 %v630, 1.0
    %v632 = vrcp.pop %v631
    %v633 = vmul.f32 %v631, %v632
    %v634 = vsub.f32 1.0, %v633
    %v635 = vmul.f32 %v632, %v634
    %v636 = vadd.f32 %v632, %v635
    %vm637 = vweird.f32 %v631
    %vm638 = vweird.f32 %v632
    %vm639 = vmor %vm637, %vm638
    %v640 = vsel %vm639, %v632, %v636
    %v641 = vand.u32 2147483647, %v631
    %vm642 = vcmp.eq.f32.partialorder %v641, 8.507059e+37
    %v643 = vand.u32 %v631, 2147483648
    %v644 = vor.u32 1.1754944e-38, %v643
    %v645 = vsel %vm642, %v644, %v640
    %v646 = vmul.f32 1.0, %v645
    %v647 = vperm.slane %v599, 0
    %vm648 = vcmask 523264
    %v650 = vsel %vm648, %v646, 0
    %652 = vmatpush.msra.mxu0 0.0
    %653 = vmatpush.msra.mxu0 0.0
    %654 = vmatpush.msra.mxu0 0.0
    %655 = vmatpush.msra.mxu0 0.0
    %656 = vmatpush.msra.mxu0 0.0
    %657 = vmatpush.msra.mxu0 0.0
    %658 = vmatpush.msra.mxu0 0.0
    %659 = vmatpush.msra.mxu0 0.0
    %660 = vmatpush.msra.mxu0 %v595
    %661 = vmatpush.msra.mxu0 %v594
    %662 = vmatpush.msra.mxu0 %v593
    %663 = vmatpush.msra.mxu0 %v592
    %664 = vmatpush.msra.mxu0 %v591
    %665 = vmatpush.msra.mxu0 %v590
    %666 = vmatpush.msra.mxu0 %v589
    %667 = vmatpush.msra.mxu0 %v588
    %668 = vmatmul.f32.gmra.mxu0 %v650
    %v669 = vpop.f32.mrf.mxu0
    %v670 = vadd.f32 %v647, %v669
    %671 = vdwg.mxu0
    %v672 = vxor.u32 %v670, 2147483648
    %v673 = vmul.f32 %v672, 1.442695
    %v674 = vpow.pop %v673
    %v675 = vadd.f32 %v674, 1.0
    %v676 = vrcp.pop %v675
    %v677 = vmul.f32 %v675, %v676
    %v678 = vsub.f32 1.0, %v677
    %v679 = vmul.f32 %v676, %v678
    %v680 = vadd.f32 %v676, %v679
    %vm681 = vweird.f32 %v675
    %vm682 = vweird.f32 %v676
    %vm683 = vmor %vm681, %vm682
    %v684 = vsel %vm683, %v676, %v680
    %v685 = vand.u32 2147483647, %v675
    %vm686 = vcmp.eq.f32.partialorder %v685, 8.507059e+37
    %v687 = vand.u32 %v675, 2147483648
    %v688 = vor.u32 1.1754944e-38, %v687
    %v689 = vsel %vm686, %v688, %v684
    %v690 = vmul.f32 1.0, %v689
    %v691 = vperm.slane %v600, 0
    %v693 = vsel %vm134, %v690, 0
    %695 = vmatpush.msra.mxu0 0.0
    %696 = vmatpush.msra.mxu0 0.0
    %697 = vmatpush.msra.mxu0 0.0
    %698 = vmatpush.msra.mxu0 0.0
    %699 = vmatpush.msra.mxu0 0.0
    %700 = vmatpush.msra.mxu0 0.0
    %701 = vmatpush.msra.mxu0 0.0
    %702 = vmatpush.msra.mxu0 0.0
    %703 = vmatpush.msra.mxu0 0.0
    %704 = vmatpush.msra.mxu0 0.0
    %705 = vmatpush.msra.mxu0 0.0
    %706 = vmatpush.msra.mxu0 0.0
    %707 = vmatpush.msra.mxu0 0.0
    %708 = vmatpush.msra.mxu0 0.0
    %709 = vmatpush.msra.mxu0 %v597
    %710 = vmatpush.msra.mxu0 %v596
    %711 = vmatmul.f32.gmra.mxu0 %v693
    %v712 = vpop.f32.mrf.mxu0
    %v713 = vadd.f32 %v691, %v712
    %714 = vdwg.mxu0
    %vm715 = vcmask 74752
    %716 = vst.msk [vmem:[#allocation5] sm:$0x3] %vm715, %v713
    // Predicated region
    $region60: #{rnn_classifier_forward.1} parent=1 // pred_check
      _
    $region61: #{rnn_classifier_forward.1} parent=1 // pred_check_branch
      %718 = sbr.rel (0) target = $region63
    $region62: #{rnn_classifier_forward.1} parent=1 // pred_region
      %720 = vsyncadd [#allocation6], 0
      %s722 = sshll.u32 [#allocation5], 4
      %s723 = int_to_ptr.vmem [resolvable:$true] %s722
      %s724 = sshll.u32 %s7, 4
      %s725 = int_to_ptr.hbm [resolvable:$true] %s724
      %727 = dma.vmem_to_hbm [thread:$0]  %s723, 32, %s725, [#allocation6]
    $region63: #{rnn_classifier_forward.1} parent=1 // pred_fallthru
      _
    // Predicated region
    $region64: #{rnn_classifier_forward.1} parent=1 // pred_check
      _
    $region65: #{rnn_classifier_forward.1} parent=1 // pred_check_branch
      %729 = sbr.rel (0) target = $region67
    $region66: #{rnn_classifier_forward.1} parent=1 // pred_region
      %731 = dma.done [#allocation6], 32
    $region67: #{rnn_classifier_forward.1} parent=1 // pred_fallthru
      _
    %732 = vsyncpa [#allocation6], 1
  %733 = vsyncmov [#allocation4]
  %s734 = vpop.sfrf %733
  %p735 = scmp.eq.s32.totalorder %s734, 0
  %p736 = pneg %p735
  %738 = shalt.err (%p736)
  %s739 = scalar_lea.sflag [#allocation4], 1
  %740 = vsyncmov %s739
  %s741 = vpop.sfrf %740
  %p742 = scmp.eq.s32.totalorder %s741, 0
  %p743 = pneg %p742
  %745 = shalt.err (%p743)

</llo_original>
